<compile_context>
chip_gen: v5e
topology: v5e:2x2
jax: 0.10.0
libtpu: 0.0.40
codegen_flags: <defaults>
</compile_context>

<pallas_src>
import math

import jax
import jax.numpy as jnp
from jax.experimental import pallas as pl
from jax.experimental.pallas import tpu as pltpu


def _normalize_kernel(x_ref, scale_ref, bias_ref, o_ref):
    # x_ref:     (TB, HW) block of the (possibly uint8) input
    # scale_ref: (TB, 1)  per-row scale  (= 1/std, optionally /255)  [resident]
    # bias_ref:  (TB, 1)  per-row bias   (= -mean/std)               [resident]
    x = x_ref[...].astype(jnp.float32)
    o_ref[...] = (x * scale_ref[...] + bias_ref[...]).astype(o_ref.dtype)


def _cdiv(a, b):
    return -(-a // b)


def _sublane_quantum(dtype):
    itemsize = jnp.dtype(dtype).itemsize
    return 8 if itemsize >= 4 else (16 if itemsize == 2 else 32)


def _vmem_capacity_bytes():
    """Generation-aware VMEM query; conservative fallback of 64 MiB (v7x
    per-TensorCore, the smallest across v5e/v6e/v7x) keeps sizing safe."""
    try:
        cap = int(getattr(pltpu.get_tpu_info(), "vmem_capacity_bytes"))
        if cap > 0:
            return cap
    except Exception:
        pass
    return 64 << 20


def _pick_row_block(R, HW, in_dtype, out_dtype, C, vmem_cap,
                    target_step_bytes=8 << 20):
    """Pick a row tile tb that is a multiple of lcm(sublane quantum, C),
    keeps the double-buffered (input + output + params) footprint well inside
    the generation's VMEM, and yields >= 2 grid steps whenever R can be split
    (v7x megacore)."""
    in_item = jnp.dtype(in_dtype).itemsize
    out_item = jnp.dtype(out_dtype).itemsize
    quantum = max(_sublane_quantum(in_dtype), _sublane_quantum(out_dtype))
    tile_q = (quantum * C) // math.gcd(quantum, C)       # lcm(quantum, C)

    if R <= tile_q:
        return R    # single full block (block dims == array dims is legal)

    # Per-row VMEM cost: double-buffered data blocks + (worst case also
    # double-buffered) lane-padded (tb, 1) f32 scale/bias columns.
    data_row = HW * (in_item + out_item)
    param_row = 2 * 128 * 4
    per_row_db = 2 * (data_row + param_row)

    budget = int(0.45 * vmem_cap)                        # leave compiler headroom
    tb_vmem = max(tile_q, budget // per_row_db)
    tb_tgt = max(tile_q, target_step_bytes // max(1, data_row))
    tb = max(tile_q, (min(tb_vmem, tb_tgt) // tile_q) * tile_q)

    # v7x: keep at least 2 grid steps so ("parallel",) splits rows over both
    # TensorCores (no-op on v5e/v6e); never a single whole-array block here.
    if tb >= R:
        tb = max(tile_q, (R // 2 // tile_q) * tile_q)

    # Rebalance so the cdiv tail block is not tiny.
    nsteps = _cdiv(R, tb)
    tb = max(tile_q, _cdiv(_cdiv(R, nsteps), tile_q) * tile_q)
    return tb


def data_augmentation_forward(x, b, mean, std, apply_to_tensor=False,
                              out_dtype=jnp.float32):
    """JAX/Pallas equivalent of DataAugmentation.forward(x, b).

    Args:
      x:    (N, C, H, W) array with N = b*t.  float32, or uint8 when
            apply_to_tensor=True (ToTensor path; cast happens in-kernel).
      b:    batch size of the '(b t) -> b t' rearrange (no-op here because
            aug_transform is identity; kept for API parity).
      mean: (C,) per-channel mean  (norm_transform parameter).
      std:  (C,) per-channel std   (norm_transform parameter).
      apply_to_tensor: emulate torchvision ToTensor's /255 scaling.
      out_dtype: float32 (module-faithful default) or bfloat16 to halve the
                 HBM write traffic on the write-bound ToTensor path.
    """
    del b  # rearrange + identity aug_transform + rearrange back == identity

    N, C, H, W = x.shape
    R, HW = N * C, H * W

    # Fold to_tensor (/255) and Normalize ((x - mean)/std) into one affine.
    inv_std = 1.0 / std.astype(jnp.float32)
    scale_c = inv_std / 255.0 if apply_to_tensor else inv_std          # (C,)
    bias_c = -mean.astype(jnp.float32) * inv_std                       # (C,)

    # Free contiguous view: (N, C, H, W) -> (N*C, H*W), lane-dense last dim.
    x2 = x.reshape(R, HW)

    # Keep output stores unmasked: pad HW up to a multiple of 128 lanes when
    # it is large enough that masked edge stores would dominate; tiny HW
    # (< 128) is left alone to avoid inflating HBM traffic.
    HW_pad = HW if (HW % 128 == 0 or HW < 128) else _cdiv(HW, 128) * 128
    if HW_pad != HW:
        x2 = jnp.pad(x2, ((0, 0), (0, HW_pad - HW)))

    vmem_cap = _vmem_capacity_bytes()
    tb = _pick_row_block(R, HW_pad, x.dtype, out_dtype, C, vmem_cap)
    grid = (_cdiv(R, tb),)

    # Per-row params.  tb is a multiple of C and every tile starts at a
    # multiple of C, so the per-row (row % C) pattern is identical for all
    # tiles: one (tb, 1) column per parameter, resident (constant index_map).
    rep = tb // C
    scale_tile = jnp.tile(scale_c, rep).reshape(tb, 1)
    bias_tile = jnp.tile(bias_c, rep).reshape(tb, 1)

    in_item = jnp.dtype(x.dtype).itemsize
    out_item = jnp.dtype(out_dtype).itemsize
    footprint = (2 * tb * HW_pad * (in_item + out_item)   # double-buffered data
                 + 2 * 2 * tb * 128 * 4)                  # params, worst case
    vmem_limit = int(min(0.9 * vmem_cap,
                         max(32 << 20, footprint + (16 << 20))))

    out2 = pl.pallas_call(
        _normalize_kernel,
        out_shape=jax.ShapeDtypeStruct((R, HW_pad), out_dtype),
        grid=grid,
        in_specs=[
            pl.BlockSpec((tb, HW_pad), lambda i: (i, 0)),
            pl.BlockSpec((tb, 1), lambda i: (0, 0)),   # resident scale column
            pl.BlockSpec((tb, 1), lambda i: (0, 0)),   # resident bias column
        ],
        out_specs=pl.BlockSpec((tb, HW_pad), lambda i: (i, 0)),
        compiler_params=pltpu.CompilerParams(
            dimension_semantics=("parallel",),
            vmem_limit_bytes=vmem_limit),
    )(x2, scale_tile, bias_tile)

    if HW_pad != HW:
        out2 = out2[:, :HW]
    return out2.reshape(N, C, H, W)


if __name__ == "__main__":
    key = jax.random.PRNGKey(0)

    # Small shapes consistent with the module: b=2 video clips, t=4 frames,
    # c=4 channels, 16x16 spatial  ->  x is '(b t) c h w' = (8, 4, 16, 16).
    b, t, C, H, W = 2, 4, 4, 16, 16
    N = b * t

    kx, ku = jax.random.split(key, 2)
    x = jax.random.uniform(kx, (N, C, H, W), dtype=jnp.float32)

    # Deterministic norm_transform parameters (per-channel mean / std).
    mean = jnp.linspace(0.1, 0.6, C, dtype=jnp.float32)
    std = jnp.linspace(0.2, 0.3, C, dtype=jnp.float32)

    # --- Path 1: float32 input, Normalize only ------------------------------
    out = data_augmentation_forward(x, b, mean, std, apply_to_tensor=False)
    out = jax.block_until_ready(out)
    ref = (x - mean.reshape(1, C, 1, 1)) / std.reshape(1, C, 1, 1)
    assert out.shape == (N, C, H, W)
    assert out.dtype == jnp.float32
    assert jnp.allclose(out, ref, atol=1e-5, rtol=1e-5)

    # --- Path 2: uint8 input, ToTensor (/255) + Normalize, f32 out ----------
    x_u8 = jax.random.randint(ku, (N, C, H, W), 0, 256, dtype=jnp.int32)
    x_u8 = x_u8.astype(jnp.uint8)
    out_u8 = data_augmentation_forward(x_u8, b, mean, std, apply_to_tensor=True)
    out_u8 = jax.block_until_ready(out_u8)
    ref_u8 = (x_u8.astype(jnp.float32) / 255.0
              - mean.reshape(1, C, 1, 1)) / std.reshape(1, C, 1, 1)
    assert out_u8.shape == (N, C, H, W)
    assert out_u8.dtype == jnp.float32
    assert jnp.allclose(out_u8, ref_u8, atol=1e-5, rtol=1e-5)

    # --- Path 3: uint8 input, bf16 output (halves HBM write traffic) --------
    out_bf16 = data_augmentation_forward(x_u8, b, mean, std,
                                         apply_to_tensor=True,
                                         out_dtype=jnp.bfloat16)
    out_bf16 = jax.block_until_ready(out_bf16)
    assert out_bf16.shape == (N, C, H, W)
    assert out_bf16.dtype == jnp.bfloat16
    assert jnp.allclose(out_bf16.astype(jnp.float32), ref_u8,
                        atol=5e-2, rtol=5e-2)

    print("KERNEL_OK")
</pallas_src>

<mosaic_0001>
module attributes {stable_mosaic.version = 11 : i64} {
  func.func @_normalize_kernel(%arg0: i32, %arg1: memref<16x256xf32, #tpu.memory_space<vmem>>, %arg2: memref<16x1xf32, #tpu.memory_space<vmem>>, %arg3: memref<16x1xf32, #tpu.memory_space<vmem>>, %arg4: memref<16x256xf32, #tpu.memory_space<vmem>>) attributes {dimension_semantics = [#tpu.dimension_semantics<parallel>], iteration_bounds = array<i64: 2>, scalar_prefetch = 0 : i64, scratch_operands = 0 : i64, tpu.core_type = #tpu.core_type<tc>, window_params = [{transform_indices = @transform_0, window_bounds = array<i64: 16, 256>}, {pipeline_mode = #tpu.pipeline_mode<synchronous>, transform_indices = @transform_1, window_bounds = array<i64: 16, 1>}, {pipeline_mode = #tpu.pipeline_mode<synchronous>, transform_indices = @transform_2, window_bounds = array<i64: 16, 1>}, {transform_indices = @transform_3, window_bounds = array<i64: 16, 256>}]} {
    %c0 = arith.constant 0 : index
    %c0_0 = arith.constant 0 : index
    %0 = vector.load %arg1[%c0, %c0_0] : memref<16x256xf32, #tpu.memory_space<vmem>>, vector<16x256xf32>
    %c0_1 = arith.constant 0 : index
    %c0_2 = arith.constant 0 : index
    %1 = vector.load %arg2[%c0_1, %c0_2] : memref<16x1xf32, #tpu.memory_space<vmem>>, vector<16x1xf32>
    %2 = vector.broadcast %1 : vector<16x1xf32> to vector<16x256xf32>
    %3 = arith.mulf %0, %2 : vector<16x256xf32>
    %c0_3 = arith.constant 0 : index
    %c0_4 = arith.constant 0 : index
    %4 = vector.load %arg3[%c0_3, %c0_4] : memref<16x1xf32, #tpu.memory_space<vmem>>, vector<16x1xf32>
    %5 = vector.broadcast %4 : vector<16x1xf32> to vector<16x256xf32>
    %6 = arith.addf %3, %5 : vector<16x256xf32>
    %c0_5 = arith.constant 0 : index
    %c0_6 = arith.constant 0 : index
    %7 = vector.load %arg4[%c0_5, %c0_6] : memref<16x256xf32, #tpu.memory_space<vmem>>, vector<16x256xf32>
    tpu.vector_store %arg4[%c0_5, %c0_6], %6 {strides = array<i32>} : memref<16x256xf32, #tpu.memory_space<vmem>>, vector<16x256xf32>,
    return
  }
  func.func @transform_0(%arg0: i32) -> (i32, i32) {
    %c0_i32 = arith.constant 0 : i32
    %c0_i32_0 = arith.constant 0 : i32
    return %arg0, %c0_i32 : i32, i32
  }
  func.func @transform_1(%arg0: i32) -> (i32, i32) {
    %c0_i32 = arith.constant 0 : i32
    %c0_i32_0 = arith.constant 0 : i32
    %c0_i32_1 = arith.constant 0 : i32
    return %c0_i32, %c0_i32_0 : i32, i32
  }
  func.func @transform_2(%arg0: i32) -> (i32, i32) {
    %c0_i32 = arith.constant 0 : i32
    %c0_i32_0 = arith.constant 0 : i32
    %c0_i32_1 = arith.constant 0 : i32
    return %c0_i32, %c0_i32_0 : i32, i32
  }
  func.func @transform_3(%arg0: i32) -> (i32, i32) {
    %c0_i32 = arith.constant 0 : i32
    %c0_i32_0 = arith.constant 0 : i32
    return %arg0, %c0_i32 : i32, i32
  }
}

</mosaic_0001>

<llo_original>
// kernel: tpu_custom_call.1
$region0: #{tpu_custom_call.1}
  #allocation0 [shape = 'u32[]', space=smem, size = 0x4, offset = 0x4, fixed_abs, tag = 'smem constant byte address 0x4 - core index']
  #allocation1 [shape = 'u32[72,128]{1,0:T(1,128)}', space=vmem, size = 0x9000, scoped, tag = 'internal scratch']
  %s0 = inlined_call_operand.hbm [shape: f32[32,256], index: 0, kind: input, shape index: {}]
  %s1 = inlined_call_operand.vmem [shape: f32[16,1], index: 1, kind: input, shape index: {}]
  %s2 = inlined_call_operand.vmem [shape: f32[16,1], index: 2, kind: input, shape index: {}]
  %s3 = inlined_call_operand.hbm [shape: f32[32,256], index: 3, kind: output, shape index: {}]
  %s4 = sld [smem:[#allocation0]]
  $region49: #{tpu_custom_call.1} parent=0
    _
  %s6 = ssub.s32 1, %s4
  %s7 = scalar_select 0, %s6, %s4
  $region1: #{tpu_custom_call.1} parent=0
    #allocation2 [shape = 'u8[32768]{0}', space=vmem, size = 0x8000, scoped, tag = 'input window, operand 0']
    #allocation3 [shape = 's32[2]{0}', space=sflag, size = 0x8, scoped, tag = 'scoped memory for tpu_custom_call.1']
    #allocation4 [shape = 's32[2]{0}', space=sflag, size = 0x8, scoped, tag = 'scoped memory for tpu_custom_call.1']
    #allocation5 [shape = 'u8[32768]{0}', space=vmem, size = 0x8000, scoped, tag = 'output window, operand 0']
    %8 = vsyncpa [#allocation3], 0
    %s9 = scalar_lea.sflag [#allocation3], 1
    %10 = vsyncpa %s9, 0
    %11 = vsyncpa [#allocation4], 0
    %s12 = scalar_lea.sflag [#allocation4], 1
    %13 = vsyncpa %s12, 0
    loop: start=0, step=1, limit=4
    $region2: #{tpu_custom_call.1} parent=1 // loop_pre_header
      _
    $region3: #{tpu_custom_call.1} parent=1 // loop_header
      %s15 = sphi 0, %s19
      %p16 = scmp.ge.s32.totalorder %s15, 4
      %s25 = sphi 0, %s27
      %s28 = sphi 0, %s25
      %s29 = sphi 0, %s28
      %s45 = sphi 0, %s29
      %s49 = sphi 0, %s49
      %s51 = sphi 0, %s49
      %s52 = sphi 0, %s51
      %s66 = sphi 0, %s52
      %s70 = sphi 0, %s70
      %s72 = sphi 0, %s70
      %s73 = sphi 0, %s72
      %s87 = sphi 0, %s73
      %s93 = sphi 0, %s95
      %s96 = sphi 0, %s93
      %s97 = sphi 0, %s96
      %s113 = sphi 0, %s97
    $region4: #{tpu_custom_call.1} parent=1 // loop_header_branch
      %18 = sbr.rel (%p16) target = $region8
    $region5: #{tpu_custom_call.1} parent=1 // loop_body
      %s20 = ssub.s32 %s15, 1
      %s21 = ssub.s32 %s15, 2
      %s22 = sadd.s32 %s15, 1
      %s23 = ssub.s32 %s15, %s22
      %p24 = scmp.eq.s32.totalorder %s23, 0
      %s26 = sadd.s32 %s25, 1
      %s27 = scalar_select %p24, %s25, %s26
      %p30 = pneg %p24
      %p31 = scmp.eq.s32.totalorder %s15, 1
      %p32 = por %p30, %p31
      %p33 = scmp.ne.s32.totalorder %s25, %s28
      %p34 = scmp.eq.s32.totalorder %s15, 0
      %p35 = por %p33, %p34
      %p36 = scmp.ne.s32.totalorder %s25, %s28
      %p37 = scmp.eq.s32.totalorder %s20, 1
      %p38 = por %p36, %p37
      %p39 = scmp.ne.s32.totalorder %s28, %s29
      %p40 = scmp.eq.s32.totalorder %s20, 0
      %p41 = por %p39, %p40
      %p42 = scmp.ne.s32.totalorder %s28, %s29
      %p43 = scmp.eq.s32.totalorder %s21, 1
      %p44 = por %p42, %p43
      %p46 = scmp.ne.s32.totalorder %s29, %s45
      %p47 = scmp.eq.s32.totalorder %s21, 0
      %p48 = por %p46, %p47
      %s50 = sadd.s32 %s49, 1
      %p53 = scmp.eq.s32.totalorder %s15, 1
      %p54 = scmp.ne.s32.totalorder %s49, %s51
      %p55 = scmp.eq.s32.totalorder %s15, 0
      %p56 = por %p54, %p55
      %p57 = scmp.ne.s32.totalorder %s49, %s51
      %p58 = scmp.eq.s32.totalorder %s20, 1
      %p59 = por %p57, %p58
      %p60 = scmp.ne.s32.totalorder %s51, %s52
      %p61 = scmp.eq.s32.totalorder %s20, 0
      %p62 = por %p60, %p61
      %p63 = scmp.ne.s32.totalorder %s51, %s52
      %p64 = scmp.eq.s32.totalorder %s21, 1
      %p65 = por %p63, %p64
      %p67 = scmp.ne.s32.totalorder %s52, %s66
      %p68 = scmp.eq.s32.totalorder %s21, 0
      %p69 = por %p67, %p68
      %s71 = sadd.s32 %s70, 1
      %p74 = scmp.eq.s32.totalorder %s15, 1
      %p75 = scmp.ne.s32.totalorder %s70, %s72
      %p76 = scmp.eq.s32.totalorder %s15, 0
      %p77 = por %p75, %p76
      %p78 = scmp.ne.s32.totalorder %s70, %s72
      %p79 = scmp.eq.s32.totalorder %s20, 1
      %p80 = por %p78, %p79
      %p81 = scmp.ne.s32.totalorder %s72, %s73
      %p82 = scmp.eq.s32.totalorder %s20, 0
      %p83 = por %p81, %p82
      %p84 = scmp.ne.s32.totalorder %s72, %s73
      %p85 = scmp.eq.s32.totalorder %s21, 1
      %p86 = por %p84, %p85
      %p88 = scmp.ne.s32.totalorder %s73, %s87
      %p89 = scmp.eq.s32.totalorder %s21, 0
      %p90 = por %p88, %p89
      %s91 = ssub.s32 %s15, %s22
      %p92 = scmp.eq.s32.totalorder %s91, 0
      %s94 = sadd.s32 %s93, 1
      %s95 = scalar_select %p92, %s93, %s94
      %p98 = pneg %p92
      %p99 = scmp.eq.s32.totalorder %s15, 1
      %p100 = por %p98, %p99
      %p101 = scmp.ne.s32.totalorder %s93, %s96
      %p102 = scmp.eq.s32.totalorder %s15, 0
      %p103 = por %p101, %p102
      %p104 = scmp.ne.s32.totalorder %s93, %s96
      %p105 = scmp.eq.s32.totalorder %s20, 1
      %p106 = por %p104, %p105
      %p107 = scmp.ne.s32.totalorder %s96, %s97
      %p108 = scmp.eq.s32.totalorder %s20, 0
      %p109 = por %p107, %p108
      %p110 = scmp.ne.s32.totalorder %s96, %s97
      %p111 = scmp.eq.s32.totalorder %s21, 1
      %p112 = por %p110, %p111
      %p114 = scmp.ne.s32.totalorder %s97, %s113
      %p115 = scmp.eq.s32.totalorder %s21, 0
      %p116 = por %p114, %p115
      %p117 = scmp.le.s32.totalorder 1, %s15
      %p118 = scmp.lt.s32.totalorder %s15, 3
      %p119 = pnand %p117, %p118
      %p120 = pneg %p119
      // Predicated region
      $region9: #{tpu_custom_call.1} parent=5 // pred_check
        _
      $region10: #{tpu_custom_call.1} parent=5 // pred_check_branch
        %122 = sbr.rel (%p119) target = $region12
      $region11: #{tpu_custom_call.1} parent=5 // pred_region
        %s123 = ssub.s32 %s15, 1
        // Predicated region
        $region13: #{tpu_custom_call.1} parent=11 // pred_check
          %p124 = pneg %p62
        $region14: #{tpu_custom_call.1} parent=11 // pred_check_branch
          %126 = sbr.rel (%p124) target = $region16
        $region15: #{tpu_custom_call.1} parent=11 // pred_region
          _
        $region16: #{tpu_custom_call.1} parent=11 // pred_fallthru
          _
        // Predicated region
        $region17: #{tpu_custom_call.1} parent=11 // pred_check
          %p127 = pneg %p83
        $region18: #{tpu_custom_call.1} parent=11 // pred_check_branch
          %129 = sbr.rel (%p127) target = $region20
        $region19: #{tpu_custom_call.1} parent=11 // pred_region
          _
        $region20: #{tpu_custom_call.1} parent=11 // pred_fallthru
          _
      $region12: #{tpu_custom_call.1} parent=5 // pred_fallthru
        _
      %p130 = scmp.lt.s32.totalorder %s15, 2
      // Predicated region
      $region21: #{tpu_custom_call.1} parent=5 // pred_check
        %p131 = pneg %p130
      $region22: #{tpu_custom_call.1} parent=5 // pred_check_branch
        %133 = sbr.rel (%p131) target = $region24
      $region23: #{tpu_custom_call.1} parent=5 // pred_region
        // Predicated region
        $region25: #{tpu_custom_call.1} parent=23 // pred_check
          %p134 = pneg %p35
        $region26: #{tpu_custom_call.1} parent=23 // pred_check_branch
          %136 = sbr.rel (%p134) target = $region28
        $region27: #{tpu_custom_call.1} parent=23 // pred_region
          %s137 = sand.u32 %s25, 1
          %s138 = scalar_lea.sflag [#allocation3], %s137
          %s139 = sand.u32 %s25, 1
          %s140 = smul.addr %s139, 32
          %s141 = scalar_lea.vmem [#allocation2], %s140
          %s142 = smul.u32 2, %s15
          %144 = vsyncadd %s138, 0
          %s145 = smul.addr %s142, 2
          %s146 = smul.addr %s145, 8
          %s147 = scalar_lea.hbm %s0, %s146
          %s148 = sshll.u32 %s147, 4
          %s149 = int_to_ptr.hbm [resolvable:$true] %s148
          %s150 = sshll.u32 %s141, 4
          %s151 = int_to_ptr.vmem [resolvable:$true] %s150
          %156 = dma.hbm_to_vmem [thread:$0]  %s149, 512, %s151, %s138, 256, 256, 16
        $region28: #{tpu_custom_call.1} parent=23 // pred_fallthru
          _
      $region24: #{tpu_custom_call.1} parent=5 // pred_fallthru
        _
      %p157 = scmp.le.s32.totalorder 1, %s15
      %p158 = scmp.lt.s32.totalorder %s15, 3
      %p159 = pnand %p157, %p158
      %p160 = pneg %p159
      // Predicated region
      $region29: #{tpu_custom_call.1} parent=5 // pred_check
        _
      $region30: #{tpu_custom_call.1} parent=5 // pred_check_branch
        %162 = sbr.rel (%p159) target = $region32
      $region31: #{tpu_custom_call.1} parent=5 // pred_region
        %s163 = ssub.s32 %s15, 1
        %s164 = sand.u32 %s28, 1
        %s165 = scalar_lea.sflag [#allocation3], %s164
        %s166 = sand.u32 %s28, 1
        %s167 = smul.addr %s166, 32
        %s168 = scalar_lea.vmem [#allocation2], %s167
        // Predicated region
        $region33: #{tpu_custom_call.1} parent=31 // pred_check
          %p169 = pneg %p41
        $region34: #{tpu_custom_call.1} parent=31 // pred_check_branch
          %171 = sbr.rel (%p169) target = $region36
        $region35: #{tpu_custom_call.1} parent=31 // pred_region
          %173 = dma.done %s165, 512
        $region36: #{tpu_custom_call.1} parent=31 // pred_fallthru
          _
        %s174 = sand.u32 %s28, 1
        %s175 = scalar_lea.sflag [#allocation3], %s174
        %s176 = sand.u32 %s28, 1
        %s177 = smul.addr %s176, 32
        %s178 = scalar_lea.vmem [#allocation2], %s177
        %p179 = pneg %p41
        %p180 = pneg %p38
        %p181 = pneg %p62
        %p182 = pneg %p59
        %p183 = pneg %p83
        %p184 = pneg %p80
        %p185 = pneg %p109
        %p186 = pneg %p106
        %s187 = sand.u32 %s96, 1
        %s188 = scalar_lea.sflag [#allocation4], %s187
        %s189 = sand.u32 %s96, 1
        %s190 = smul.addr %s189, 32
        %s191 = scalar_lea.vmem [#allocation5], %s190
        %s192 = smul.u32 2, %s20
        %s193 = smul.u32 2, %s20
        %v194 = vld [vmem:[%s168] sm:$0xff]
        %v195 = vld [vmem:[%s168 + $0x8] sm:$0xff]
        %v196 = vld [vmem:[%s168 + $0x10] sm:$0xff]
        %v197 = vld [vmem:[%s168 + $0x18] sm:$0xff]
        %v198 = vld [vmem:[%s1] sm:$0xff]
        %v199 = vld [vmem:[%s1 + $0x8] sm:$0xff]
        %201 = vset.pattern.permute.xlu0 0
        %202 = vperm.xlu0 %201, %v198
        %v203 = vpop.permute.xlu0 %202
        %206 = vset.pattern.permute.xlu0 0
        %207 = vperm.xlu0 %206, %v199
        %v208 = vpop.permute.xlu0 %207
        %v210 = vmul.f32 %v194, %v203
        %v211 = vmul.f32 %v195, %v203
        %v212 = vmul.f32 %v196, %v208
        %v213 = vmul.f32 %v197, %v208
        %v214 = vld [vmem:[%s2] sm:$0xff]
        %v215 = vld [vmem:[%s2 + $0x8] sm:$0xff]
        %217 = vset.pattern.permute.xlu0 0
        %218 = vperm.xlu0 %217, %v214
        %v219 = vpop.permute.xlu0 %218
        %222 = vset.pattern.permute.xlu0 0
        %223 = vperm.xlu0 %222, %v215
        %v224 = vpop.permute.xlu0 %223
        %v226 = vadd.f32 %v210, %v219
        %v227 = vadd.f32 %v211, %v219
        %v228 = vadd.f32 %v212, %v224
        %v229 = vadd.f32 %v213, %v224
        %230 = vst [vmem:[%s191] sm:$0xff] %v226
        %231 = vst [vmem:[%s191 + $0x8] sm:$0xff] %v227
        %232 = vst [vmem:[%s191 + $0x10] sm:$0xff] %v228
        %233 = vst [vmem:[%s191 + $0x18] sm:$0xff] %v229
        %s234 = sand.u32 %s96, 1
        %s235 = scalar_lea.sflag [#allocation4], %s234
        %s236 = sand.u32 %s96, 1
        %s237 = smul.addr %s236, 32
        %s238 = scalar_lea.vmem [#allocation5], %s237
        // Predicated region
        $region37: #{tpu_custom_call.1} parent=31 // pred_check
          %p239 = pneg %p106
        $region38: #{tpu_custom_call.1} parent=31 // pred_check_branch
          %241 = sbr.rel (%p239) target = $region40
        $region39: #{tpu_custom_call.1} parent=31 // pred_region
          %s242 = smul.u32 2, %s20
          %244 = vsyncadd %s235, 0
          %s245 = smul.addr %s242, 2
          %s246 = smul.addr %s245, 8
          %s247 = scalar_lea.hbm %s3, %s246
          %s248 = sshll.u32 %s238, 4
          %s249 = int_to_ptr.vmem [resolvable:$true] %s248
          %s250 = sshll.u32 %s247, 4
          %s251 = int_to_ptr.hbm [resolvable:$true] %s250
          %256 = dma.vmem_to_hbm [thread:$0]  %s249, 512, %s251, %s235, 256, 256, 16
        $region40: #{tpu_custom_call.1} parent=31 // pred_fallthru
          _
      $region32: #{tpu_custom_call.1} parent=5 // pred_fallthru
        _
      %p257 = scmp.le.s32.totalorder 2, %s15
      // Predicated region
      $region41: #{tpu_custom_call.1} parent=5 // pred_check
        %p258 = pneg %p257
      $region42: #{tpu_custom_call.1} parent=5 // pred_check_branch
        %260 = sbr.rel (%p258) target = $region44
      $region43: #{tpu_custom_call.1} parent=5 // pred_region
        %s261 = ssub.s32 %s15, 2
        // Predicated region
        $region45: #{tpu_custom_call.1} parent=43 // pred_check
          %p262 = pneg %p112
        $region46: #{tpu_custom_call.1} parent=43 // pred_check_branch
          %264 = sbr.rel (%p262) target = $region48
        $region47: #{tpu_custom_call.1} parent=43 // pred_region
          %s265 = sand.u32 %s97, 1
          %s266 = scalar_lea.sflag [#allocation4], %s265
          %s267 = sand.u32 %s97, 1
          %s268 = smul.addr %s267, 32
          %s269 = scalar_lea.vmem [#allocation5], %s268
          %271 = dma.done %s266, 512
        $region48: #{tpu_custom_call.1} parent=43 // pred_fallthru
          _
      $region44: #{tpu_custom_call.1} parent=5 // pred_fallthru
        _
    $region6: #{tpu_custom_call.1} parent=1 // loop_footer
      %s19 = sadd.s32 1, %s15
    $region7: #{tpu_custom_call.1} parent=1 // loop_footer_branch
      %14 = sbr.rel target = $region3
    $region8: #{tpu_custom_call.1} parent=1 // loop_exit
      _
    %272 = vsyncpa [#allocation3], 1
    %s273 = scalar_lea.sflag [#allocation3], 1
    %274 = vsyncpa %s273, 1
    %275 = vsyncpa [#allocation4], 1
    %s276 = scalar_lea.sflag [#allocation4], 1
    %277 = vsyncpa %s276, 1

</llo_original>
